<compile_context>
chip_gen: v6e
topology: v6e:2x2x1
jax: 0.10.0
libtpu: 0.0.40
codegen_flags: <defaults>
</compile_context>

<pallas_src>
import functools

import jax
import jax.numpy as jnp
from jax.experimental import pallas as pl
from jax.experimental.pallas import tpu as pltpu

INF = 1.0e12


def _self_attention_kernel(has_mask, *refs):
    if has_mask:
        x_ref, w_ref, mask_ref, reps_ref, att_ref = refs
    else:
        x_ref, w_ref, reps_ref, att_ref = refs
        mask_ref = None

    H = x_ref.shape[-1] // 2

    # Per-half loads straight from the ref (no full-width f32 temporary).
    h = (x_ref[:, :, :H].astype(jnp.float32)
         + x_ref[:, :, H:].astype(jnp.float32))                    # (TB, S, H)

    w = w_ref[...].astype(jnp.float32).reshape(1, 1, H)            # (1, 1, H)
    # att_score[b, s] = sum_h tanh(h[b, s, h]) * w[h]   (lane reduce)
    score = jnp.sum(jnp.tanh(h) * w, axis=-1)                      # (TB, S)

    if mask_ref is not None:
        # Single select instead of score*m + (-INF)*(1-m).
        score = jnp.where(mask_ref[...] != 0.0, score, -INF)

    # softmax over the sequence axis (dim=1 of the original (B, S, 1) tensor)
    score_max = jnp.max(score, axis=-1, keepdims=True)             # (TB, 1)
    e = jnp.exp(score - score_max)
    denom = jnp.sum(e, axis=-1, keepdims=True)                     # (TB, 1)
    # denom is only TB scalars per block; the exact reciprocal costs nothing.
    att = e * pl.reciprocal(denom, approx=False)                   # (TB, S)

    # reps[b, :] = att[b, :] @ h[b]  -- batched (1,S)x(S,H) contraction on the
    # MXU; avoids the (TB,S,H) broadcast temporary + sublane reduce.
    reps = jnp.einsum("bqs,bsh->bqh", att[:, None, :], h,
                      preferred_element_type=jnp.float32)[:, 0, :]  # (TB, H)

    reps_ref[...] = jnp.tanh(reps)
    att_ref[...] = att


def _round_up(x, m):
    return (x + m - 1) // m * m


def _vmem_limit_bytes():
    """Explicit scoped-VMEM limit: ~3/4 of physical VMEM (96 MiB on 128 MiB
    parts, 48 MiB on v7x's 64 MiB), with a conservative fallback."""
    try:
        cap = int(pltpu.get_tpu_info().vmem_capacity_bytes)
    except Exception:
        cap = 64 << 20          # v7x per-TensorCore VMEM; safe everywhere
    return int(min(cap * 3 // 4, 100 << 20))


def _choose_tb(B, S, F, itemsize, budget_bytes):
    """Batch-tile size: as large as the VMEM budget allows (counting the f32
    in-kernel intermediates, not just the input block), multiple of 8, and
    small enough to keep >= 4-8 grid steps for larger batches (pipelining and
    2 TensorCores on v7x)."""
    if B <= 8:
        return B
    H = F // 2
    S_sub = _round_up(S, 8)
    F_ln = _round_up(F, 128)
    H_ln = _round_up(H, 128)
    S_ln = _round_up(S, 128)
    per_row = (
        2 * S_sub * F_ln * itemsize     # double-buffered native-dtype x block
        + 2 * S_ln * 4                  # double-buffered mask block (f32)
        + 2 * (H_ln + S_ln) * 4         # double-buffered reps/att output blocks
        + 2 * S_sub * H_ln * 4          # f32 h + tanh(h) working set
        + 4 * S_ln * 4                  # score / e / att f32 temporaries
    )
    tb_vmem = max(8, (budget_bytes // max(per_row, 1)) // 8 * 8)
    tb_cap = max(8, (B // 8) * 8)       # never exceed the batch extent
    tb = min(tb_vmem, tb_cap, 1024)
    # Keep enough grid steps: >=8 for large batches, >=4 medium, >=2 small.
    if B >= 64:
        steps = 8
    elif B >= 32:
        steps = 4
    else:
        steps = 2
    tb = min(tb, max(8, _round_up(-(-B // steps), 8)))
    return max(8, tb)


def self_attention(x, att_weight, mask=None):
    """
    x:          (B, S, 2H) float32/bfloat16 (native dtype accepted)
    att_weight: (1, H, 1)  (the nn.Parameter)
    mask:       optional (B, S) float/bool (1 = real token, 0 = pad)
    returns (reps (B, H) f32, att (B, S, 1) f32)
    """
    B, S, F = x.shape
    H = F // 2

    w = att_weight.reshape(1, H).astype(jnp.float32)           # tiny, shared

    vmem_limit = _vmem_limit_bytes()
    TB = _choose_tb(B, S, F, x.dtype.itemsize, budget_bytes=vmem_limit // 2)
    grid = (pl.cdiv(B, TB),)        # ragged last block: OOB rows dropped on write

    in_specs = [
        pl.BlockSpec((TB, S, F), lambda b: (b, 0, 0)),          # x, native dtype
        pl.BlockSpec((1, H), lambda b: (0, 0)),                 # shared att weight
    ]
    args = [x, w]
    has_mask = mask is not None
    if has_mask:
        mask2 = mask.astype(jnp.float32).reshape(B, S)          # lane-dense
        in_specs.append(pl.BlockSpec((TB, S), lambda b: (b, 0)))
        args.append(mask2)

    kernel = functools.partial(_self_attention_kernel, has_mask)

    reps, att = pl.pallas_call(
        kernel,
        out_shape=(
            jax.ShapeDtypeStruct((B, H), jnp.float32),
            jax.ShapeDtypeStruct((B, S), jnp.float32),
        ),
        grid_spec=pltpu.PrefetchScalarGridSpec(
            num_scalar_prefetch=0,
            grid=grid,
            in_specs=in_specs,
            out_specs=[
                pl.BlockSpec((TB, H), lambda b: (b, 0)),        # reps (lane-dense)
                pl.BlockSpec((TB, S), lambda b: (b, 0)),        # att  (lane-dense)
            ],
        ),
        compiler_params=pltpu.CompilerParams(
            dimension_semantics=("parallel",),
            vmem_limit_bytes=vmem_limit,
        ),
    )(*args)

    return reps, att.reshape(B, S, 1)


def self_attention_ref(x, att_weight, mask=None):
    """Pure-JAX reference mirroring the PyTorch forward (full-precision dots)."""
    B, S, F = x.shape
    H = F // 2
    xf = x.astype(jnp.float32)
    h = xf[:, :, :H] + xf[:, :, H:]
    w = jnp.tile(att_weight.astype(jnp.float32), (B, 1, 1))     # (B, H, 1)
    score = jnp.einsum("bsh,bho->bso", jnp.tanh(h), w,
                       precision=jax.lax.Precision.HIGHEST)     # (B, S, 1)
    if mask is not None:
        m = mask.astype(jnp.float32).reshape(B, S)[..., None]
        score = score * m + (-INF) * (1.0 - m)
    att = jax.nn.softmax(score, axis=1)
    reps = jnp.einsum("bhs,bso->bho", jnp.transpose(h, (0, 2, 1)), att,
                      precision=jax.lax.Precision.HIGHEST)[..., 0]
    return jnp.tanh(reps), att


if __name__ == "__main__":
    key = jax.random.PRNGKey(0)
    B, S, H = 2, 8, 32
    k1, _ = jax.random.split(key)
    x = jax.random.normal(k1, (B, S, 2 * H), dtype=jnp.float32)
    # att_weight initialized as in the module: torch.ones(1, hidden_size, 1)
    att_weight = jnp.ones((1, H, 1), dtype=jnp.float32)
    # mask: last two positions of batch 1 are padding
    mask = jnp.ones((B, S), dtype=jnp.float32).at[1, S - 2:].set(0.0)

    reps, att = self_attention(x, att_weight, mask)
    jax.block_until_ready((reps, att))

    reps_ref, att_ref = self_attention_ref(x, att_weight, mask)
    assert reps.shape == (B, H) and att.shape == (B, S, 1)
    # att never touches the MXU -> tight tolerance; reps goes through the MXU
    # contraction -> small slack for matmul pass accumulation order.
    assert jnp.allclose(att, att_ref, atol=1e-5, rtol=1e-5)
    assert jnp.allclose(reps, reps_ref, atol=5e-3, rtol=5e-3)

    # also check the specialized mask=None path (no mask DMA at all)
    reps_nm, att_nm = self_attention(x, att_weight, None)
    jax.block_until_ready((reps_nm, att_nm))
    reps_nm_ref, att_nm_ref = self_attention_ref(x, att_weight, None)
    assert jnp.allclose(att_nm, att_nm_ref, atol=1e-5, rtol=1e-5)
    assert jnp.allclose(reps_nm, reps_nm_ref, atol=5e-3, rtol=5e-3)

    print("KERNEL_OK")
</pallas_src>

<mosaic_0001>
module attributes {stable_mosaic.version = 11 : i64} {
  func.func @_self_attention_kernel(%arg0: i32, %arg1: memref<2x8x64xf32, #tpu.memory_space<vmem>>, %arg2: memref<1x32xf32, #tpu.memory_space<vmem>>, %arg3: memref<2x8xf32, #tpu.memory_space<vmem>>, %arg4: memref<2x32xf32, #tpu.memory_space<vmem>>, %arg5: memref<2x8xf32, #tpu.memory_space<vmem>>) attributes {dimension_semantics = [#tpu.dimension_semantics<parallel>], iteration_bounds = array<i64: 1>, scalar_prefetch = 0 : i64, scratch_operands = 0 : i64, tpu.core_type = #tpu.core_type<tc>, window_params = [{transform_indices = @transform_0, window_bounds = array<i64: 2, 8, 64>}, {pipeline_mode = #tpu.pipeline_mode<synchronous>, transform_indices = @transform_1, window_bounds = array<i64: 1, 32>}, {transform_indices = @transform_2, window_bounds = array<i64: 2, 8>}, {transform_indices = @transform_3, window_bounds = array<i64: 2, 32>}, {transform_indices = @transform_4, window_bounds = array<i64: 2, 8>}]} {
    %c0 = arith.constant 0 : index
    %c0_0 = arith.constant 0 : index
    %c0_1 = arith.constant 0 : index
    %0 = vector.load %arg1[%c0, %c0_0, %c0_1] : memref<2x8x64xf32, #tpu.memory_space<vmem>>, vector<2x8x32xf32>
    %c0_2 = arith.constant 0 : index
    %c0_3 = arith.constant 0 : index
    %c32 = arith.constant 32 : index
    %1 = vector.load %arg1[%c0_2, %c0_3, %c32] : memref<2x8x64xf32, #tpu.memory_space<vmem>>, vector<2x8x32xf32>
    %2 = arith.addf %0, %1 : vector<2x8x32xf32>
    %c0_4 = arith.constant 0 : index
    %c0_5 = arith.constant 0 : index
    %3 = vector.load %arg2[%c0_4, %c0_5] : memref<1x32xf32, #tpu.memory_space<vmem>>, vector<1x32xf32>
    %4 = vector.shape_cast %3 : vector<1x32xf32> to vector<1x1x32xf32>
    %5 = math.tanh %2 : vector<2x8x32xf32>
    %6 = vector.broadcast %4 : vector<1x1x32xf32> to vector<2x8x32xf32>
    %7 = arith.mulf %5, %6 : vector<2x8x32xf32>
    %cst = arith.constant dense<0.000000e+00> : vector<2x8xf32>
    %8 = vector.multi_reduction <add>, %7, %cst [2] : vector<2x8x32xf32> to vector<2x8xf32>
    %c0_6 = arith.constant 0 : index
    %c0_7 = arith.constant 0 : index
    %9 = vector.load %arg3[%c0_6, %c0_7] : memref<2x8xf32, #tpu.memory_space<vmem>>, vector<2x8xf32>
    %cst_8 = arith.constant 0.000000e+00 : f32
    %10 = vector.broadcast %cst_8 : f32 to vector<2x8xf32>
    %11 = arith.cmpf one, %9, %10 : vector<2x8xf32>
    %cst_9 = arith.constant -9.99999995E+11 : f32
    %12 = vector.broadcast %cst_9 : f32 to vector<2x8xf32>
    %13 = arith.select %11, %8, %12 : vector<2x8xi1>, vector<2x8xf32>
    %cst_10 = arith.constant dense<0xFF800000> : vector<2xf32>
    %14 = vector.multi_reduction <maximumf>, %13, %cst_10 [1] : vector<2x8xf32> to vector<2xf32>
    %15 = vector.shape_cast %14 : vector<2xf32> to vector<2x1xf32>
    %16 = vector.broadcast %15 : vector<2x1xf32> to vector<2x8xf32>
    %17 = arith.subf %13, %16 : vector<2x8xf32>
    %18 = math.exp %17 : vector<2x8xf32>
    %cst_11 = arith.constant dense<0.000000e+00> : vector<2xf32>
    %19 = vector.multi_reduction <add>, %18, %cst_11 [1] : vector<2x8xf32> to vector<2xf32>
    %20 = vector.shape_cast %19 : vector<2xf32> to vector<2x1xf32>
    %21 = tpu.reciprocal %20 : vector<2x1xf32> -> vector<2x1xf32>
    %22 = vector.broadcast %21 : vector<2x1xf32> to vector<2x8xf32>
    %23 = arith.mulf %18, %22 : vector<2x8xf32>
    %24 = vector.shape_cast %23 : vector<2x8xf32> to vector<2x1x8xf32>
    "tpu.trace_start"() <{level = 10 : i32, message = "bqs,bsh->bqh"}> : () -> ()
    %cst_12 = arith.constant dense<0.000000e+00> : vector<2x1x32xf32>
    %25 = tpu.matmul %24, %2, %cst_12 {dimension_numbers = #tpu.dot_dimension_numbers<[2], [1], [1], [2], [0, 0, 0, 1, 1, 2], [0], [0]>} : vector<2x1x8xf32>, vector<2x8x32xf32>, vector<2x1x32xf32> -> vector<2x1x32xf32>
    "tpu.trace_stop"() : () -> ()
    %26 = vector.shape_cast %25 : vector<2x1x32xf32> to vector<2x32xf32>
    %27 = math.tanh %26 : vector<2x32xf32>
    %c0_13 = arith.constant 0 : index
    %c0_14 = arith.constant 0 : index
    %28 = vector.load %arg4[%c0_13, %c0_14] : memref<2x32xf32, #tpu.memory_space<vmem>>, vector<2x32xf32>
    tpu.vector_store %arg4[%c0_13, %c0_14], %27 {strides = array<i32>} : memref<2x32xf32, #tpu.memory_space<vmem>>, vector<2x32xf32>,
    %c0_15 = arith.constant 0 : index
    %c0_16 = arith.constant 0 : index
    %29 = vector.load %arg5[%c0_15, %c0_16] : memref<2x8xf32, #tpu.memory_space<vmem>>, vector<2x8xf32>
    tpu.vector_store %arg5[%c0_15, %c0_16], %23 {strides = array<i32>} : memref<2x8xf32, #tpu.memory_space<vmem>>, vector<2x8xf32>,
    return
  }
  func.func @transform_0(%arg0: i32) -> (i32, i32, i32) {
    %c0_i32 = arith.constant 0 : i32
    %c0_i32_0 = arith.constant 0 : i32
    %c0_i32_1 = arith.constant 0 : i32
    return %arg0, %c0_i32, %c0_i32_0 : i32, i32, i32
  }
  func.func @transform_1(%arg0: i32) -> (i32, i32) {
    %c0_i32 = arith.constant 0 : i32
    %c0_i32_0 = arith.constant 0 : i32
    %c0_i32_1 = arith.constant 0 : i32
    return %c0_i32, %c0_i32_0 : i32, i32
  }
  func.func @transform_2(%arg0: i32) -> (i32, i32) {
    %c0_i32 = arith.constant 0 : i32
    %c0_i32_0 = arith.constant 0 : i32
    return %arg0, %c0_i32 : i32, i32
  }
  func.func @transform_3(%arg0: i32) -> (i32, i32) {
    %c0_i32 = arith.constant 0 : i32
    %c0_i32_0 = arith.constant 0 : i32
    return %arg0, %c0_i32 : i32, i32
  }
  func.func @transform_4(%arg0: i32) -> (i32, i32) {
    %c0_i32 = arith.constant 0 : i32
    %c0_i32_0 = arith.constant 0 : i32
    return %arg0, %c0_i32 : i32, i32
  }
}

</mosaic_0001>

<llo_original>
// kernel: tpu_custom_call.1
$region0: #{tpu_custom_call.1}
  #allocation0 [shape = 'u32[]', space=smem, size = 0x4, offset = 0x4, fixed_abs, tag = 'smem constant byte address 0x4 - core index']
  #allocation1 [shape = 'u32[144,128]{1,0:T(1,128)}', space=vmem, size = 0x12000, scoped, tag = 'internal scratch']
  %s0 = inlined_call_operand.hbm [shape: f32[2,8,64], index: 0, kind: input, shape index: {}]
  %s1 = inlined_call_operand.vmem [shape: f32[1,32], index: 1, kind: input, shape index: {}]
  %s2 = inlined_call_operand.vmem [shape: f32[2,8], index: 2, kind: input, shape index: {}]
  %s3 = inlined_call_operand.hbm [shape: f32[2,32], index: 3, kind: output, shape index: {0}]
  %s4 = inlined_call_operand.hbm [shape: f32[2,8], index: 4, kind: output, shape index: {1}]
  %5 = xla_tuple %s3, %s4
  %s6 = sld [smem:[#allocation0]]
  $region34: #{tpu_custom_call.1} parent=0
    _
  %s8 = ssub.s32 1, %s6
  %s9 = scalar_select 0, %s8, %s6
  $region1: #{tpu_custom_call.1} parent=0
    #allocation2 [shape = 'u8[8192]{0}', space=vmem, size = 0x2000, scoped, tag = 'input window, operand 0, single buffered']
    #allocation3 [shape = 's32[1]{0}', space=sflag, size = 0x4, scoped, tag = 'scoped memory for tpu_custom_call.1']
    #allocation4 [shape = 's32[1]{0}', space=sflag, size = 0x4, scoped, tag = 'scoped memory for tpu_custom_call.1']
    #allocation5 [shape = 'u8[1024]{0}', space=vmem, size = 0x400, scoped, tag = 'output window, operand 0, single buffered']
    #allocation6 [shape = 'u8[1024]{0}', space=vmem, size = 0x400, scoped, tag = 'output window, operand 1, single buffered']
    #allocation7 [shape = 's32[1]{0}', space=sflag, size = 0x4, scoped, tag = 'scoped memory for tpu_custom_call.1']
    %10 = vsyncpa [#allocation3], 0
    %11 = vsyncpa [#allocation4], 0
    %12 = vsyncpa [#allocation7], 0
    // Predicated region
    $region2: #{tpu_custom_call.1} parent=1 // pred_check
      _
    $region3: #{tpu_custom_call.1} parent=1 // pred_check_branch
      %14 = sbr.rel (0) target = $region5
    $region4: #{tpu_custom_call.1} parent=1 // pred_region
      %s16 = ssub.s32 256, 256
      %17 = vsyncadd [#allocation3], %s16
      %s18 = sshll.u32 [#allocation2], 4
      %s19 = int_to_ptr.vmem [resolvable:$true] %s18
      %24 = dma.hbm_to_vmem [thread:$0]  %s0, 256, %s19, [#allocation3], 128, 128, 8
    $region5: #{tpu_custom_call.1} parent=1 // pred_fallthru
      _
    // Predicated region
    $region6: #{tpu_custom_call.1} parent=1 // pred_check
      _
    $region7: #{tpu_custom_call.1} parent=1 // pred_check_branch
      %26 = sbr.rel (0) target = $region9
    $region8: #{tpu_custom_call.1} parent=1 // pred_region
      _
    $region9: #{tpu_custom_call.1} parent=1 // pred_fallthru
      _
    // Predicated region
    $region10: #{tpu_custom_call.1} parent=1 // pred_check
      _
    $region11: #{tpu_custom_call.1} parent=1 // pred_check_branch
      %28 = sbr.rel (0) target = $region13
    $region12: #{tpu_custom_call.1} parent=1 // pred_region
      _
    $region13: #{tpu_custom_call.1} parent=1 // pred_fallthru
      _
    // Predicated region
    $region14: #{tpu_custom_call.1} parent=1 // pred_check
      _
    $region15: #{tpu_custom_call.1} parent=1 // pred_check_branch
      %30 = sbr.rel (0) target = $region17
    $region16: #{tpu_custom_call.1} parent=1 // pred_region
      %31 = dma.done [#allocation3], 256
    $region17: #{tpu_custom_call.1} parent=1 // pred_fallthru
      _
    %v32 = vld [vmem:[#allocation2] sm:$0xff]
    %v33 = vld [vmem:[#allocation2 + $0x8] sm:$0xff]
    %36 = vrot.lane.b32.xlu0 %v32, 96
    %v37 = vpop.permute.xlu0 %36
    %38 = vrot.lane.b32.xlu0 %v33, 96
    %v39 = vpop.permute.xlu0 %38
    %v42 = vadd.f32 %v32, %v37
    %v43 = vadd.f32 %v33, %v39
    %v44 = vld [vmem:[%s1] sm:$0x1]
    %v45 = vtanh.pop %v42
    %v46 = vtanh.pop %v43
    %v48 = vlaneseq
    %v49 = vshrl.u32 %v48, 7
    %v50 = vsub.s32 0, %v49
    %v51 = vrot.slane %v44, %v50
    %v53 = vmul.f32 %v45, %v51
    %v54 = vmul.f32 %v46, %v51
    %vm55 = vcmask 261120
    %v56 = vsel %vm55, %v53, 0.0
    %57 = vadd.xlane.f32.xlu0 %v56
    %v58 = vpop.xlane.xlu0 %57
    %v59 = vsel %vm55, %v54, 0.0
    %60 = vadd.xlane.f32.xlu0 %v59
    %v61 = vpop.xlane.xlu0 %60
    %v62 = vld [vmem:[%s2] sm:$0x3]
    %vm63 = vcmp.ne.f32.partialorder %v62, 0.0
    %v66 = vlaneseq
    %v67 = vand.u32 %v66, 127
    %v68 = vlaneseq
    %v69 = vshrl.u32 %v68, 7
    %v70 = vsub.s32 %v67, %v69
    %v71 = vrot.slane %v58, %v70
    %v72 = vlaneseq
    %v73 = vshrl.u32 %v72, 7
    %v74 = vsub.s32 %v67, %v73
    %v75 = vrot.slane %v61, %v74
    %vm76 = vcmask 1041409
    %v77 = vsel %vm76, %v75, %v71
    %v79 = vsel %vm63, %v77, -1e+12
    %vm80 = vcmask 58368
    %v81 = vsel %vm80, %v79, -inf
    %82 = vmax.xlane.f32.xlu0 %v81
    %v83 = vpop.xlane.xlu0 %82
    %v84 = vsub.f32 %v79, %v83
    %v85 = vmul.f32 %v84, 1.442695
    %v86 = vpow.pop %v85
    %v87 = vsel %vm80, %v86, 0.0
    %88 = vadd.xlane.f32.xlu0 %v87
    %v89 = vpop.xlane.xlu0 %88
    %v90 = vrcp.pop %v89
    %v91 = vmul.f32 %v86, %v90
    %v94 = vunpack.c.l.s4 1966171168
    %v95 = vunpack.c.0.s8 %v94
    %v96 = vlaneseq
    %v97 = vshrl.u32 %v96, 7
    %v98 = vsub.s32 %v95, %v97
    %v99 = vrot.slane %v91, %v98
    %v100 = vcombine.high %v99, %v99
    %v102 = vunpack.c.l.s4 1966171168
    %v103 = vunpack.c.0.s8 %v102
    %v104 = vlaneseq
    %v105 = vshrl.u32 %v104, 7
    %v106 = vsub.s32 %v103, %v105
    %v107 = vrot.slane %v99, %v106
    %v109 = vunpack.c.l.s4 1966171168
    %v110 = vunpack.c.0.s8 %v109
    %v111 = vlaneseq
    %v112 = vshrl.u32 %v111, 7
    %v113 = vsub.s32 %v110, %v112
    %v114 = vrot.slane %v100, %v113
    %vm115 = vcmask 64512
    %v116 = vsel %vm115, %v107, 0
    %118 = vmatprep.subr.mxu0 0.0
    %119 = vmatpush1.msra.mxu0 0.0
    %120 = vmatprep.subr.mxu0 0.0
    %121 = vmatpush1.msra.mxu0 0.0
    %122 = vmatprep.subr.mxu0 0.0
    %123 = vmatpush1.msra.mxu0 0.0
    %124 = vmatprep.subr.mxu0 0.0
    %125 = vmatpush1.msra.mxu0 0.0
    %126 = vmatprep.subr.mxu0 0.0
    %127 = vmatpush1.msra.mxu0 0.0
    %128 = vmatprep.subr.mxu0 0.0
    %129 = vmatpush1.msra.mxu0 0.0
    %130 = vmatprep.subr.mxu0 0.0
    %131 = vmatpush1.msra.mxu0 0.0
    %132 = vmatprep.subr.mxu0 0.0
    %133 = vmatpush1.msra.mxu0 0.0
    %134 = vmatprep.subr.mxu0 0.0
    %135 = vmatpush1.msra.mxu0 0.0
    %136 = vmatprep.subr.mxu0 0.0
    %137 = vmatpush1.msra.mxu0 0.0
    %138 = vmatprep.subr.mxu0 0.0
    %139 = vmatpush1.msra.mxu0 0.0
    %140 = vmatprep.subr.mxu0 0.0
    %141 = vmatpush1.msra.mxu0 0.0
    %142 = vmatprep.subr.mxu0 0.0
    %143 = vmatpush1.msra.mxu0 0.0
    %144 = vmatprep.subr.mxu0 0.0
    %145 = vmatpush1.msra.mxu0 0.0
    %146 = vmatprep.subr.mxu0 0.0
    %147 = vmatpush1.msra.mxu0 0.0
    %148 = vmatprep.subr.mxu0 0.0
    %149 = vmatpush1.msra.mxu0 %v42
    %150 = vmatprep.subr.mxu0 0.0
    %151 = vmatpush2.msra.mxu0 0.0
    %152 = vmatprep.subr.mxu0 0.0
    %153 = vmatpush2.msra.mxu0 0.0
    %154 = vmatprep.subr.mxu0 0.0
    %155 = vmatpush2.msra.mxu0 0.0
    %156 = vmatprep.subr.mxu0 0.0
    %157 = vmatpush2.msra.mxu0 0.0
    %158 = vmatprep.subr.mxu0 0.0
    %159 = vmatpush2.msra.mxu0 0.0
    %160 = vmatprep.subr.mxu0 0.0
    %161 = vmatpush2.msra.mxu0 0.0
    %162 = vmatprep.subr.mxu0 0.0
    %163 = vmatpush2.msra.mxu0 0.0
    %164 = vmatprep.subr.mxu0 0.0
    %165 = vmatpush2.msra.mxu0 0.0
    %166 = vmatprep.subr.mxu0 0.0
    %167 = vmatpush2.msra.mxu0 0.0
    %168 = vmatprep.subr.mxu0 0.0
    %169 = vmatpush2.msra.mxu0 0.0
    %170 = vmatprep.subr.mxu0 0.0
    %171 = vmatpush2.msra.mxu0 0.0
    %172 = vmatprep.subr.mxu0 0.0
    %173 = vmatpush2.msra.mxu0 0.0
    %174 = vmatprep.subr.mxu0 0.0
    %175 = vmatpush2.msra.mxu0 0.0
    %176 = vmatprep.subr.mxu0 0.0
    %177 = vmatpush2.msra.mxu0 0.0
    %178 = vmatprep.subr.mxu0 0.0
    %179 = vmatpush2.msra.mxu0 0.0
    %180 = vmatprep.subr.mxu0 0.0
    %181 = vmatpush2.msra.mxu0 0.0
    %182 = vmatprep.mubr.f32.mxu0 0.0
    %183 = vmatmul.mubr.f32.gmra.mxu0 %v116
    %v184 = vpop.f32.mrf.mxu0
    %v185 = vadd.f32 0.0, %v184
    %v186 = vpop.f32.mrf.mxu0
    %187 = vdwg.mxu0
    %v188 = vsel %vm115, %v114, 0
    %190 = vmatprep.subr.mxu0 0.0
    %191 = vmatpush1.msra.mxu0 0.0
    %192 = vmatprep.subr.mxu0 0.0
    %193 = vmatpush1.msra.mxu0 0.0
    %194 = vmatprep.subr.mxu0 0.0
    %195 = vmatpush1.msra.mxu0 0.0
    %196 = vmatprep.subr.mxu0 0.0
    %197 = vmatpush1.msra.mxu0 0.0
    %198 = vmatprep.subr.mxu0 0.0
    %199 = vmatpush1.msra.mxu0 0.0
    %200 = vmatprep.subr.mxu0 0.0
    %201 = vmatpush1.msra.mxu0 0.0
    %202 = vmatprep.subr.mxu0 0.0
    %203 = vmatpush1.msra.mxu0 0.0
    %204 = vmatprep.subr.mxu0 0.0
    %205 = vmatpush1.msra.mxu0 0.0
    %206 = vmatprep.subr.mxu0 0.0
    %207 = vmatpush1.msra.mxu0 0.0
    %208 = vmatprep.subr.mxu0 0.0
    %209 = vmatpush1.msra.mxu0 0.0
    %210 = vmatprep.subr.mxu0 0.0
    %211 = vmatpush1.msra.mxu0 0.0
    %212 = vmatprep.subr.mxu0 0.0
    %213 = vmatpush1.msra.mxu0 0.0
    %214 = vmatprep.subr.mxu0 0.0
    %215 = vmatpush1.msra.mxu0 0.0
    %216 = vmatprep.subr.mxu0 0.0
    %217 = vmatpush1.msra.mxu0 0.0
    %218 = vmatprep.subr.mxu0 0.0
    %219 = vmatpush1.msra.mxu0 0.0
    %220 = vmatprep.subr.mxu0 0.0
    %221 = vmatpush1.msra.mxu0 %v43
    %222 = vmatprep.subr.mxu0 0.0
    %223 = vmatpush2.msra.mxu0 0.0
    %224 = vmatprep.subr.mxu0 0.0
    %225 = vmatpush2.msra.mxu0 0.0
    %226 = vmatprep.subr.mxu0 0.0
    %227 = vmatpush2.msra.mxu0 0.0
    %228 = vmatprep.subr.mxu0 0.0
    %229 = vmatpush2.msra.mxu0 0.0
    %230 = vmatprep.subr.mxu0 0.0
    %231 = vmatpush2.msra.mxu0 0.0
    %232 = vmatprep.subr.mxu0 0.0
    %233 = vmatpush2.msra.mxu0 0.0
    %234 = vmatprep.subr.mxu0 0.0
    %235 = vmatpush2.msra.mxu0 0.0
    %236 = vmatprep.subr.mxu0 0.0
    %237 = vmatpush2.msra.mxu0 0.0
    %238 = vmatprep.subr.mxu0 0.0
    %239 = vmatpush2.msra.mxu0 0.0
    %240 = vmatprep.subr.mxu0 0.0
    %241 = vmatpush2.msra.mxu0 0.0
    %242 = vmatprep.subr.mxu0 0.0
    %243 = vmatpush2.msra.mxu0 0.0
    %244 = vmatprep.subr.mxu0 0.0
    %245 = vmatpush2.msra.mxu0 0.0
    %246 = vmatprep.subr.mxu0 0.0
    %247 = vmatpush2.msra.mxu0 0.0
    %248 = vmatprep.subr.mxu0 0.0
    %249 = vmatpush2.msra.mxu0 0.0
    %250 = vmatprep.subr.mxu0 0.0
    %251 = vmatpush2.msra.mxu0 0.0
    %252 = vmatprep.subr.mxu0 0.0
    %253 = vmatpush2.msra.mxu0 0.0
    %254 = vmatprep.mubr.f32.mxu0 0.0
    %255 = vmatmul.mubr.f32.gmra.mxu0 %v188
    %v256 = vpop.f32.mrf.mxu0
    %v257 = vadd.f32 0.0, %v256
    %v258 = vpop.f32.mrf.mxu0
    %259 = vdwg.mxu0
    %v260 = vtanh.pop %v185
    %v261 = vtanh.pop %v257
    %v264 = vrot.slane %v261, 7
    %v265 = vsel %vm76, %v264, %v260
    %vm267 = vcmask 254976
    %268 = vst.msk [vmem:[#allocation5] sm:$0x3] %vm267, %v265
    %269 = vst.msk [vmem:[#allocation6] sm:$0x3] %vm80, %v91
    // Predicated region
    $region18: #{tpu_custom_call.1} parent=1 // pred_check
      _
    $region19: #{tpu_custom_call.1} parent=1 // pred_check_branch
      %271 = sbr.rel (0) target = $region21
    $region20: #{tpu_custom_call.1} parent=1 // pred_region
      %s273 = ssub.s32 32, 32
      %274 = vsyncadd [#allocation4], %s273
      %s276 = sshll.u32 [#allocation5], 4
      %s277 = int_to_ptr.vmem [resolvable:$true] %s276
      %279 = dma.vmem_to_hbm [thread:$0]  %s277, 32, %s3, [#allocation4]
    $region21: #{tpu_custom_call.1} parent=1 // pred_fallthru
      _
    // Predicated region
    $region22: #{tpu_custom_call.1} parent=1 // pred_check
      _
    $region23: #{tpu_custom_call.1} parent=1 // pred_check_branch
      %281 = sbr.rel (0) target = $region25
    $region24: #{tpu_custom_call.1} parent=1 // pred_region
      %s283 = ssub.s32 32, 32
      %284 = vsyncadd [#allocation7], %s283
      %s286 = sshll.u32 [#allocation6], 4
      %s287 = int_to_ptr.vmem [resolvable:$true] %s286
      %289 = dma.vmem_to_hbm [thread:$0]  %s287, 32, %s4, [#allocation7]
    $region25: #{tpu_custom_call.1} parent=1 // pred_fallthru
      _
    // Predicated region
    $region26: #{tpu_custom_call.1} parent=1 // pred_check
      _
    $region27: #{tpu_custom_call.1} parent=1 // pred_check_branch
      %291 = sbr.rel (0) target = $region29
    $region28: #{tpu_custom_call.1} parent=1 // pred_region
      %292 = dma.done [#allocation4], 32
    $region29: #{tpu_custom_call.1} parent=1 // pred_fallthru
      _
    // Predicated region
    $region30: #{tpu_custom_call.1} parent=1 // pred_check
      _
    $region31: #{tpu_custom_call.1} parent=1 // pred_check_branch
      %294 = sbr.rel (0) target = $region33
    $region32: #{tpu_custom_call.1} parent=1 // pred_region
      %295 = dma.done [#allocation7], 32
    $region33: #{tpu_custom_call.1} parent=1 // pred_fallthru
      _
    %296 = vsyncpa [#allocation3], 1
    %297 = vsyncpa [#allocation4], 1
    %298 = vsyncpa [#allocation7], 1

</llo_original>
